<compile_context>
chip_gen: v7x
topology: tpu7x:2x2x1
jax: 0.10.0
libtpu: 0.0.40
codegen_flags: <defaults>
</compile_context>

<pallas_src>
import math

import numpy as np
import jax
import jax.numpy as jnp
from jax.experimental import pallas as pl
from jax.experimental.pallas import tpu as pltpu


# ----------------------------------------------------------------------------
# Kernels
# ----------------------------------------------------------------------------
def _sae_kernel_acc_in_out(x_ref, w_enc_ref, b_enc_ref, w_dec_ref, b_dec_ref,
                           out_ref):
    """f32 output path: the resident output block IS the accumulator."""
    hk = pl.program_id(1)

    @pl.when(hk == 0)
    def _init():
        # Seed the accumulator with the decoder bias (added exactly once).
        out_ref[...] = jnp.broadcast_to(b_dec_ref[...], out_ref.shape)

    # Encoder slice: (bt, S) @ (S, th) -> (bt, th), f32 accumulation on the MXU.
    h = jnp.dot(x_ref[...], w_enc_ref[...], preferred_element_type=jnp.float32)
    h = jnp.maximum(h + b_enc_ref[...], 0.0)          # bias + ReLU in f32 (VPU)

    # Decoder partial: (bt, th) @ (th, S) accumulated into the resident out tile.
    out_ref[...] += jnp.dot(h.astype(w_dec_ref.dtype), w_dec_ref[...],
                            preferred_element_type=jnp.float32)


def _sae_kernel_scratch_acc(x_ref, w_enc_ref, b_enc_ref, w_dec_ref, b_dec_ref,
                            out_ref, acc_ref):
    """Narrow-output path: f32 VMEM accumulator, single cast + store at the end."""
    hk = pl.program_id(1)

    @pl.when(hk == 0)
    def _init():
        acc_ref[...] = jnp.broadcast_to(b_dec_ref[...], acc_ref.shape)

    h = jnp.dot(x_ref[...], w_enc_ref[...], preferred_element_type=jnp.float32)
    h = jnp.maximum(h + b_enc_ref[...], 0.0)
    acc_ref[...] += jnp.dot(h.astype(w_dec_ref.dtype), w_dec_ref[...],
                            preferred_element_type=jnp.float32)

    @pl.when(hk == pl.num_programs(1) - 1)
    def _finalize():
        out_ref[...] = acc_ref[...].astype(out_ref.dtype)


# ----------------------------------------------------------------------------
# Tiling / chip helpers
# ----------------------------------------------------------------------------
def _round_up(n, m):
    return (n + m - 1) // m * m


def _chip_config():
    """Per-generation tile defaults, hidden alignment and VMEM budget."""
    try:
        kind = jax.devices()[0].device_kind.lower()
    except Exception:
        kind = ""
    vmem_phys = None
    try:
        vmem_phys = getattr(pltpu.get_tpu_info(), "vmem_capacity_bytes", None)
    except Exception:
        vmem_phys = None

    if "v7" in kind:
        # 64 MiB VMEM per TC, 2 TCs per chip: smaller hidden tile, big batch tile,
        # and keep >= 2 batch tiles so both TensorCores get work.
        cfg = dict(batch_tile=512, hidden_tile=512, align=256, num_cores=2,
                   vmem_phys=vmem_phys or (64 << 20))
    elif "v6" in kind:
        cfg = dict(batch_tile=1024, hidden_tile=1024, align=256, num_cores=1,
                   vmem_phys=vmem_phys or (128 << 20))
    elif "v5" in kind:
        cfg = dict(batch_tile=512, hidden_tile=1024, align=128, num_cores=1,
                   vmem_phys=vmem_phys or (128 << 20))
    else:  # unknown / older generation: stay conservative
        cfg = dict(batch_tile=512, hidden_tile=512, align=128, num_cores=1,
                   vmem_phys=vmem_phys or (64 << 20))

    # ~82% of physical VMEM, leaving headroom for Mosaic internal scratch.
    cfg["vmem_limit"] = max(32 << 20, min(int(cfg["vmem_phys"] * 0.82), 110 << 20))
    return cfg


def _pick_hidden_tile(H, default_ht, align):
    if H <= default_ht:
        return H                        # single hidden tile (block == full dim)
    # Prefer a lane-aligned divisor of H so the weights never need padding.
    t = (default_ht // align) * align
    while t >= align:
        if H % t == 0:
            return t
        t -= align
    return default_ht                   # fallback: per-call padding (rare)


def _pick_batch_tile(B, default_bt, num_cores):
    if B > default_bt:
        return default_bt
    if num_cores > 1 and B > 16:
        # Keep >= 2 batch tiles so the "parallel" axis shards across TensorCores.
        return _round_up((B + 1) // 2, 8)
    return B


def _fit_tiles(bt, ht, S, w_bytes, out_bytes, use_scratch, vmem_limit):
    """Shrink auto-chosen tiles until the double-buffered working set fits."""
    def est(bt_, ht_):
        b = 2 * bt_ * S * w_bytes        # x (double buffered)
        b += 2 * S * ht_ * w_bytes       # w_enc tile
        b += 2 * ht_ * S * w_bytes       # w_dec tile
        b += 2 * ht_ * 4 + 2 * S * 4     # biases
        b += 2 * bt_ * S * out_bytes     # out tile
        if use_scratch:
            b += bt_ * S * 4             # f32 accumulator
        return b

    while est(bt, ht) > vmem_limit and bt > 64:
        bt //= 2
    while est(bt, ht) > vmem_limit and ht > 256:
        ht //= 2
    return bt, ht


# ----------------------------------------------------------------------------
# Parameter preparation (one-time cast / pad -> no per-call weight HBM copies)
# ----------------------------------------------------------------------------
def prepare_params(w_enc, b_enc, w_dec, b_dec, *, compute_dtype=jnp.bfloat16,
                   hidden_align=None):
    """One-time cast (weights -> compute_dtype, biases -> f32) + hidden padding.

    Store the result and pass it to sparse_autoencoder_forward so the kernel
    never re-casts / re-pads the full weight matrices per call.
    Zero-padding of hidden units is exact: relu(x @ 0 + 0) = 0 and the matching
    decoder rows are zero, so padded units contribute nothing.
    """
    S, H = w_enc.shape
    assert w_dec.shape == (H, S) and b_enc.shape == (H,) and b_dec.shape == (S,)
    if hidden_align is None:
        hidden_align = _chip_config()["align"]
    Hp = H if H <= hidden_align else _round_up(H, hidden_align)

    w_enc_c = w_enc.astype(compute_dtype)
    w_dec_c = w_dec.astype(compute_dtype)
    b_enc_c = b_enc.astype(jnp.float32)
    b_dec_c = b_dec.astype(jnp.float32)
    if Hp != H:
        w_enc_c = jnp.pad(w_enc_c, ((0, 0), (0, Hp - H)))
        w_dec_c = jnp.pad(w_dec_c, ((0, Hp - H), (0, 0)))
        b_enc_c = jnp.pad(b_enc_c, (0, Hp - H))
    return w_enc_c, b_enc_c, w_dec_c, b_dec_c


# ----------------------------------------------------------------------------
# Forward wrapper
# ----------------------------------------------------------------------------
def sparse_autoencoder_forward(x, w_enc, b_enc, w_dec, b_dec, *,
                               batch_tile=None, hidden_tile=None,
                               compute_dtype=jnp.bfloat16,
                               out_dtype=None,
                               vmem_limit_bytes=None):
    """SAE forward with a single fused Pallas TPU kernel.

    x      : (B, S)
    w_enc  : (S, H)   (PyTorch stores (H, S); pre-transposed here)
    b_enc  : (H,)
    w_dec  : (H, S)
    b_dec  : (S,)

    For best performance, pass weights already in compute_dtype (see
    prepare_params); the wrapper only casts when dtypes differ.
    """
    B, S = x.shape
    S2, H = w_enc.shape
    assert S2 == S and w_dec.shape == (H, S)
    assert b_enc.shape == (H,) and b_dec.shape == (S,)

    cfg = _chip_config()
    out_dtype = np.dtype(x.dtype if out_dtype is None else out_dtype)
    if vmem_limit_bytes is None:
        vmem_limit_bytes = cfg["vmem_limit"]

    auto_tiles = batch_tile is None and hidden_tile is None
    if batch_tile is None:
        batch_tile = _pick_batch_tile(B, cfg["batch_tile"], cfg["num_cores"])
    if hidden_tile is None:
        hidden_tile = _pick_hidden_tile(H, cfg["hidden_tile"], cfg["align"])

    # out_ref doubles as the f32 accumulator when the output itself is f32;
    # otherwise keep an f32 scratch and write the narrow dtype once at the end.
    acc_in_out = out_dtype == np.dtype(np.float32)

    w_bytes = np.dtype(compute_dtype).itemsize
    out_bytes = out_dtype.itemsize
    if auto_tiles:
        batch_tile, hidden_tile = _fit_tiles(batch_tile, hidden_tile, S, w_bytes,
                                             out_bytes, not acc_in_out,
                                             vmem_limit_bytes)

    Bp = _round_up(B, batch_tile)
    Hp = _round_up(H, hidden_tile)

    # Only cast when not already in compute_dtype (prepared params skip this).
    xc = x if x.dtype == np.dtype(compute_dtype) else x.astype(compute_dtype)
    w_enc_c = w_enc if w_enc.dtype == np.dtype(compute_dtype) else w_enc.astype(compute_dtype)
    w_dec_c = w_dec if w_dec.dtype == np.dtype(compute_dtype) else w_dec.astype(compute_dtype)
    b_enc2 = b_enc.reshape(1, H).astype(jnp.float32)
    b_dec2 = b_dec.reshape(1, S).astype(jnp.float32)

    if Bp != B:
        xc = jnp.pad(xc, ((0, Bp - B), (0, 0)))
    if Hp != H:
        # Fallback only: prepare_params / the hidden-tile picker normally keep
        # Hp == H so no per-call weight padding happens.  Zero padding is exact
        # because relu(0 + 0) = 0 feeds all-zero decoder rows.
        w_enc_c = jnp.pad(w_enc_c, ((0, 0), (0, Hp - H)))
        w_dec_c = jnp.pad(w_dec_c, ((0, Hp - H), (0, 0)))
        b_enc2 = jnp.pad(b_enc2, ((0, 0), (0, Hp - H)))

    grid = (Bp // batch_tile, Hp // hidden_tile)

    cost = pl.CostEstimate(
        flops=4 * Bp * S * Hp,                          # two GEMMs, 2*M*N*K each
        transcendentals=0,
        bytes_accessed=int(
            Bp * S * w_bytes                            # x streamed once
            + Bp * S * out_bytes                        # output written once
            + grid[0] * 2 * S * Hp * w_bytes            # weights re-streamed per batch tile
            + (Hp + S) * 4),                            # biases
    )

    in_specs = [
        pl.BlockSpec((batch_tile, S), lambda i, k: (i, 0)),    # x tile (resident over k)
        pl.BlockSpec((S, hidden_tile), lambda i, k: (0, k)),   # w_enc col-tile
        pl.BlockSpec((1, hidden_tile), lambda i, k: (0, k)),   # b_enc slice
        pl.BlockSpec((hidden_tile, S), lambda i, k: (k, 0)),   # w_dec row-tile
        pl.BlockSpec((1, S), lambda i, k: (0, 0)),             # b_dec
    ]
    out_spec = pl.BlockSpec((batch_tile, S), lambda i, k: (i, 0))

    if acc_in_out:
        kernel = _sae_kernel_acc_in_out
        scratch = []
    else:
        kernel = _sae_kernel_scratch_acc
        scratch = [pltpu.VMEM((batch_tile, S), jnp.float32)]

    out = pl.pallas_call(
        kernel,
        out_shape=jax.ShapeDtypeStruct((Bp, S), out_dtype),
        grid_spec=pltpu.PrefetchScalarGridSpec(
            num_scalar_prefetch=0,
            grid=grid,
            in_specs=in_specs,
            out_specs=out_spec,
            scratch_shapes=scratch,
        ),
        compiler_params=pltpu.CompilerParams(
            dimension_semantics=("parallel", "arbitrary"),
            vmem_limit_bytes=int(vmem_limit_bytes),
        ),
        cost_estimate=cost,
    )(xc, w_enc_c, b_enc2, w_dec_c, b_dec2)

    if Bp != B:
        out = out[:B]
    return out


# ----------------------------------------------------------------------------
# Init matching the PyTorch module
# ----------------------------------------------------------------------------
def init_params(key, stream_width, hidden_width, dtype=jnp.float32):
    """Deterministic init matching the PyTorch module's __init__ semantics."""
    k1, k2, k3, k4 = jax.random.split(key, 4)

    # encoder: PyTorch weight shape (hidden, stream), fan_in = stream, relu gain
    enc_bound = math.sqrt(2.0) * math.sqrt(3.0 / stream_width)
    w_enc_pt = jax.random.uniform(k1, (hidden_width, stream_width), dtype,
                                  minval=-enc_bound, maxval=enc_bound)
    b_enc_bound = 1.0 / math.sqrt(stream_width)
    b_enc = jax.random.uniform(k2, (hidden_width,), dtype,
                               minval=-b_enc_bound, maxval=b_enc_bound)

    # decoder: PyTorch weight shape (stream, hidden), fan_in = hidden, linear gain
    dec_bound = math.sqrt(3.0 / hidden_width)
    w_dec_pt = jax.random.uniform(k3, (stream_width, hidden_width), dtype,
                                  minval=-dec_bound, maxval=dec_bound)
    b_dec_bound = 1.0 / math.sqrt(hidden_width)
    b_dec = jax.random.uniform(k4, (stream_width,), dtype,
                               minval=-b_dec_bound, maxval=b_dec_bound)

    # pre-transpose for the x @ W layout used by the kernel
    return w_enc_pt.T, b_enc, w_dec_pt.T, b_dec


if __name__ == "__main__":
    # --- small shapes consistent with the module (hidden > stream) -----------
    B, STREAM, HIDDEN = 8, 16, 32
    dtype = jnp.float32  # mirrors the CPU branch of the module

    key = jax.random.PRNGKey(0)
    kx, kp = jax.random.split(key)
    x = jax.random.normal(kx, (B, STREAM), dtype)
    w_enc, b_enc, w_dec, b_dec = init_params(kp, STREAM, HIDDEN, dtype)

    ref = jnp.maximum(x @ w_enc + b_enc, 0.0) @ w_dec + b_dec

    # f32 compute path (single tile on both grid axes)
    out_f32 = jax.block_until_ready(
        sparse_autoencoder_forward(x, w_enc, b_enc, w_dec, b_dec,
                                   compute_dtype=jnp.float32))
    assert out_f32.shape == (B, STREAM)
    assert jnp.allclose(out_f32, ref, atol=5e-2, rtol=5e-2)

    # bf16 fast path with pre-cast ("prepared") params — no per-call weight cast
    prep = prepare_params(w_enc, b_enc, w_dec, b_dec)
    out_bf16 = jax.block_until_ready(sparse_autoencoder_forward(x, *prep))
    assert out_bf16.shape == (B, STREAM)
    assert jnp.allclose(out_bf16, ref, atol=5e-2, rtol=5e-2)

    # --- larger shape exercising the tiled (batch, hidden) grid + padding ----
    # Explicit tiles so the test is chip-independent: bt=256 pads B 384->512,
    # th=512 -> grid (2, 4); accumulation happens directly in the f32 out block.
    B2, S2, H2 = 384, 256, 2048
    k1, k2 = jax.random.split(jax.random.PRNGKey(1))
    x2 = jax.random.normal(k1, (B2, S2), dtype)
    p2 = init_params(k2, S2, H2, dtype)
    prep2 = prepare_params(*p2)
    out2 = jax.block_until_ready(
        sparse_autoencoder_forward(x2, *prep2, batch_tile=256, hidden_tile=512))
    assert out2.shape == (B2, S2)

    # bf16-faithful reference (same cast points as the kernel) -> checks the
    # tiled accumulation / bias handling, independent of bf16 rounding.
    h2 = jnp.dot(x2.astype(jnp.bfloat16), prep2[0],
                 preferred_element_type=jnp.float32) + prep2[1]
    h2 = jnp.maximum(h2, 0.0).astype(jnp.bfloat16)
    ref2 = (jnp.dot(h2, prep2[2], preferred_element_type=jnp.float32)
            + prep2[3]).astype(dtype)
    assert jnp.allclose(out2, ref2, atol=1e-2, rtol=1e-2)

    # TODO(synk): get_l1_loss / get_activations are training-time utilities, not
    # part of forward(); they could reuse the encoder half of this kernel.

    print("KERNEL_OK")
</pallas_src>

<mosaic_0001>
module attributes {stable_mosaic.version = 11 : i64} {
  func.func @_sae_kernel_acc_in_out(%arg0: i32, %arg1: i32, %arg2: memref<8x16xf32, #tpu.memory_space<vmem>>, %arg3: memref<16x32xf32, #tpu.memory_space<vmem>>, %arg4: memref<1x32xf32, #tpu.memory_space<vmem>>, %arg5: memref<32x16xf32, #tpu.memory_space<vmem>>, %arg6: memref<1x16xf32, #tpu.memory_space<vmem>>, %arg7: memref<8x16xf32, #tpu.memory_space<vmem>>) attributes {dimension_semantics = [#tpu.dimension_semantics<parallel>, #tpu.dimension_semantics<arbitrary>], iteration_bounds = array<i64: 1, 1>, scalar_prefetch = 0 : i64, scratch_operands = 0 : i64, tpu.core_type = #tpu.core_type<tc>, window_params = [{transform_indices = @transform_0, window_bounds = array<i64: 8, 16>}, {transform_indices = @transform_1, window_bounds = array<i64: 16, 32>}, {transform_indices = @transform_2, window_bounds = array<i64: 1, 32>}, {transform_indices = @transform_3, window_bounds = array<i64: 32, 16>}, {pipeline_mode = #tpu.pipeline_mode<synchronous>, transform_indices = @transform_4, window_bounds = array<i64: 1, 16>}, {transform_indices = @transform_5, window_bounds = array<i64: 8, 16>}]} {
    %c0_i32 = arith.constant 0 : i32
    %0 = arith.cmpi eq, %arg1, %c0_i32 : i32
    %1 = arith.extui %0 : i1 to i32
    %c0_i32_0 = arith.constant 0 : i32
    %2 = arith.cmpi ne, %1, %c0_i32_0 : i32
    scf.if %2 {
      %c0_14 = arith.constant 0 : index
      %c0_15 = arith.constant 0 : index
      %16 = vector.load %arg6[%c0_14, %c0_15] : memref<1x16xf32, #tpu.memory_space<vmem>>, vector<1x16xf32>
      %17 = vector.shape_cast %16 : vector<1x16xf32> to vector<1x16xf32>
      %18 = vector.broadcast %17 : vector<1x16xf32> to vector<8x16xf32>
      %c0_16 = arith.constant 0 : index
      %c0_17 = arith.constant 0 : index
      %19 = vector.load %arg7[%c0_16, %c0_17] : memref<8x16xf32, #tpu.memory_space<vmem>>, vector<8x16xf32>
      tpu.vector_store %arg7[%c0_16, %c0_17], %18 {strides = array<i32>} : memref<8x16xf32, #tpu.memory_space<vmem>>, vector<8x16xf32>,
    } else {
    }
    %c0 = arith.constant 0 : index
    %c0_1 = arith.constant 0 : index
    %3 = vector.load %arg2[%c0, %c0_1] : memref<8x16xf32, #tpu.memory_space<vmem>>, vector<8x16xf32>
    %c0_2 = arith.constant 0 : index
    %c0_3 = arith.constant 0 : index
    %4 = vector.load %arg3[%c0_2, %c0_3] : memref<16x32xf32, #tpu.memory_space<vmem>>, vector<16x32xf32>
    %cst = arith.constant dense<0.000000e+00> : vector<8x32xf32>
    %5 = tpu.matmul %3, %4, %cst {dimension_numbers = #tpu.dot_dimension_numbers<[1], [0], [0], [1], [0, 0, 1, 1], [], []>} : vector<8x16xf32>, vector<16x32xf32>, vector<8x32xf32> -> vector<8x32xf32>
    %c0_4 = arith.constant 0 : index
    %c0_5 = arith.constant 0 : index
    %6 = vector.load %arg4[%c0_4, %c0_5] : memref<1x32xf32, #tpu.memory_space<vmem>>, vector<1x32xf32>
    %7 = vector.broadcast %6 : vector<1x32xf32> to vector<8x32xf32>
    %8 = arith.addf %5, %7 : vector<8x32xf32>
    %cst_6 = arith.constant 0.000000e+00 : f32
    %9 = vector.broadcast %cst_6 : f32 to vector<8x32xf32>
    %10 = arith.maximumf %8, %9 : vector<8x32xf32>
    %c0_7 = arith.constant 0 : index
    %c0_8 = arith.constant 0 : index
    %11 = vector.load %arg7[%c0_7, %c0_8] : memref<8x16xf32, #tpu.memory_space<vmem>>, vector<8x16xf32>
    %c0_9 = arith.constant 0 : index
    %c0_10 = arith.constant 0 : index
    %12 = vector.load %arg5[%c0_9, %c0_10] : memref<32x16xf32, #tpu.memory_space<vmem>>, vector<32x16xf32>
    %cst_11 = arith.constant dense<0.000000e+00> : vector<8x16xf32>
    %13 = tpu.matmul %10, %12, %cst_11 {dimension_numbers = #tpu.dot_dimension_numbers<[1], [0], [0], [1], [0, 0, 1, 1], [], []>} : vector<8x32xf32>, vector<32x16xf32>, vector<8x16xf32> -> vector<8x16xf32>
    %14 = arith.addf %11, %13 : vector<8x16xf32>
    %c0_12 = arith.constant 0 : index
    %c0_13 = arith.constant 0 : index
    %15 = vector.load %arg7[%c0_12, %c0_13] : memref<8x16xf32, #tpu.memory_space<vmem>>, vector<8x16xf32>
    tpu.vector_store %arg7[%c0_12, %c0_13], %14 {strides = array<i32>} : memref<8x16xf32, #tpu.memory_space<vmem>>, vector<8x16xf32>,
    return
  }
  func.func @transform_0(%arg0: i32, %arg1: i32) -> (i32, i32) {
    %c0_i32 = arith.constant 0 : i32
    %c0_i32_0 = arith.constant 0 : i32
    return %arg0, %c0_i32 : i32, i32
  }
  func.func @transform_1(%arg0: i32, %arg1: i32) -> (i32, i32) {
    %c0_i32 = arith.constant 0 : i32
    %c0_i32_0 = arith.constant 0 : i32
    return %c0_i32, %arg1 : i32, i32
  }
  func.func @transform_2(%arg0: i32, %arg1: i32) -> (i32, i32) {
    %c0_i32 = arith.constant 0 : i32
    %c0_i32_0 = arith.constant 0 : i32
    return %c0_i32, %arg1 : i32, i32
  }
  func.func @transform_3(%arg0: i32, %arg1: i32) -> (i32, i32) {
    %c0_i32 = arith.constant 0 : i32
    %c0_i32_0 = arith.constant 0 : i32
    return %arg1, %c0_i32 : i32, i32
  }
  func.func @transform_4(%arg0: i32, %arg1: i32) -> (i32, i32) {
    %c0_i32 = arith.constant 0 : i32
    %c0_i32_0 = arith.constant 0 : i32
    %c0_i32_1 = arith.constant 0 : i32
    return %c0_i32, %c0_i32_0 : i32, i32
  }
  func.func @transform_5(%arg0: i32, %arg1: i32) -> (i32, i32) {
    %c0_i32 = arith.constant 0 : i32
    %c0_i32_0 = arith.constant 0 : i32
    return %arg0, %c0_i32 : i32, i32
  }
}

</mosaic_0001>

<llo_original>
// kernel: tpu_custom_call.1
$region0: #{tpu_custom_call.1}
  #allocation0 [shape = 'u32[]', space=smem, size = 0x4, offset = 0x4, fixed_abs, tag = 'smem constant byte address 0x4 - core index']
  #allocation1 [shape = 'u32[144,128]{1,0:T(1,128)}', space=vmem, size = 0x12000, scoped, tag = 'internal scratch']
  %s0 = inlined_call_operand.vmem [shape: f32[8,16], index: 0, kind: input, shape index: {}]
  %s1 = inlined_call_operand.vmem [shape: f32[16,32], index: 1, kind: input, shape index: {}]
  %s2 = inlined_call_operand.vmem [shape: f32[1,32], index: 2, kind: input, shape index: {}]
  %s3 = inlined_call_operand.vmem [shape: f32[32,16], index: 3, kind: input, shape index: {}]
  %s4 = inlined_call_operand.vmem [shape: f32[1,16], index: 4, kind: input, shape index: {}]
  %s5 = inlined_call_operand.hbm [shape: f32[8,16], index: 5, kind: output, shape index: {}]
  %s6 = sld [smem:[#allocation0]]
  $region34: #{tpu_custom_call.1} parent=0
    _
  %s8 = ssub.s32 1, %s6
  %s9 = scalar_select 0, %s8, %s6
  $region1: #{tpu_custom_call.1} parent=0
    #allocation2 [shape = 'u8[4096]{0}', space=vmem, size = 0x1000, scoped, tag = 'output window, operand 0, single buffered']
    #allocation3 [shape = 's32[1]{0}', space=sflag, size = 0x4, scoped, tag = 'scoped memory for tpu_custom_call.1']
    %10 = vsyncpa [#allocation3], 0
    // Predicated region
    $region2: #{tpu_custom_call.1} parent=1 // pred_check
      _
    $region3: #{tpu_custom_call.1} parent=1 // pred_check_branch
      %12 = sbr.rel (0) target = $region5
    $region4: #{tpu_custom_call.1} parent=1 // pred_region
      _
    $region5: #{tpu_custom_call.1} parent=1 // pred_fallthru
      _
    // Predicated region
    $region6: #{tpu_custom_call.1} parent=1 // pred_check
      _
    $region7: #{tpu_custom_call.1} parent=1 // pred_check_branch
      %14 = sbr.rel (0) target = $region9
    $region8: #{tpu_custom_call.1} parent=1 // pred_region
      _
    $region9: #{tpu_custom_call.1} parent=1 // pred_fallthru
      _
    // Predicated region
    $region10: #{tpu_custom_call.1} parent=1 // pred_check
      _
    $region11: #{tpu_custom_call.1} parent=1 // pred_check_branch
      %16 = sbr.rel (0) target = $region13
    $region12: #{tpu_custom_call.1} parent=1 // pred_region
      _
    $region13: #{tpu_custom_call.1} parent=1 // pred_fallthru
      _
    // Predicated region
    $region14: #{tpu_custom_call.1} parent=1 // pred_check
      _
    $region15: #{tpu_custom_call.1} parent=1 // pred_check_branch
      %18 = sbr.rel (0) target = $region17
    $region16: #{tpu_custom_call.1} parent=1 // pred_region
      _
    $region17: #{tpu_custom_call.1} parent=1 // pred_fallthru
      _
    // Predicated region
    $region18: #{tpu_custom_call.1} parent=1 // pred_check
      _
    $region19: #{tpu_custom_call.1} parent=1 // pred_check_branch
      %20 = sbr.rel (0) target = $region21
    $region20: #{tpu_custom_call.1} parent=1 // pred_region
      _
    $region21: #{tpu_custom_call.1} parent=1 // pred_fallthru
      _
    %p21 = scmp.eq.s32.totalorder 0, 0
    // Predicated region
    $region22: #{tpu_custom_call.1} parent=1 // pred_check
      %p22 = pneg %p21
    $region23: #{tpu_custom_call.1} parent=1 // pred_check_branch
      %24 = sbr.rel (%p22) target = $region25
    $region24: #{tpu_custom_call.1} parent=1 // pred_region
      %v25 = vld [vmem:[%s4] sm:$0x1]
      %v27 = vlaneseq
      %v28 = vshrl.u32 %v27, 7
      %v29 = vsub.s32 0, %v28
      %v30 = vrot.slane %v25, %v29
      %vm32 = vcmask 130048
      %33 = vst.msk [vmem:[#allocation2] sm:$0xff] %vm32, %v30
    $region25: #{tpu_custom_call.1} parent=1 // pred_fallthru
      _
    %v34 = vld [vmem:[%s0] sm:$0xff]
    %v35 = vld [vmem:[%s1] sm:$0xff]
    %v36 = vld [vmem:[%s1 + $0x8] sm:$0xff]
    %v37 = vld [vmem:[%s2] sm:$0x1]
    %v39 = vlaneseq
    %v40 = vshrl.u32 %v39, 7
    %v41 = vsub.s32 0, %v40
    %v42 = vrot.slane %v37, %v41
    %vm44 = vcmask 130048
    %v46 = vsel %vm44, %v34, 0
    %48 = vmatprep.subr.mxu0 0.0
    %49 = vmatpush1.msra.mxu0 %v35
    %50 = vmatprep.subr.mxu0 0.0
    %51 = vmatpush1.msra.mxu0 %v36
    %52 = vmatprep.subr.mxu0 0.0
    %53 = vmatpush1.msra.mxu0 0.0
    %54 = vmatprep.subr.mxu0 0.0
    %55 = vmatpush1.msra.mxu0 0.0
    %56 = vmatprep.subr.mxu0 0.0
    %57 = vmatpush1.msra.mxu0 0.0
    %58 = vmatprep.subr.mxu0 0.0
    %59 = vmatpush1.msra.mxu0 0.0
    %60 = vmatprep.subr.mxu0 0.0
    %61 = vmatpush1.msra.mxu0 0.0
    %62 = vmatprep.subr.mxu0 0.0
    %63 = vmatpush1.msra.mxu0 0.0
    %64 = vmatprep.subr.mxu0 0.0
    %65 = vmatpush1.msra.mxu0 0.0
    %66 = vmatprep.subr.mxu0 0.0
    %67 = vmatpush1.msra.mxu0 0.0
    %68 = vmatprep.subr.mxu0 0.0
    %69 = vmatpush1.msra.mxu0 0.0
    %70 = vmatprep.subr.mxu0 0.0
    %71 = vmatpush1.msra.mxu0 0.0
    %72 = vmatprep.subr.mxu0 0.0
    %73 = vmatpush1.msra.mxu0 0.0
    %74 = vmatprep.subr.mxu0 0.0
    %75 = vmatpush1.msra.mxu0 0.0
    %76 = vmatprep.subr.mxu0 0.0
    %77 = vmatpush1.msra.mxu0 0.0
    %78 = vmatprep.subr.mxu0 0.0
    %79 = vmatpush1.msra.mxu0 0.0
    %80 = vmatprep.subr.mxu0 0.0
    %81 = vmatpush1.msra.mxu0 0.0
    %82 = vmatprep.subr.mxu0 0.0
    %83 = vmatpush1.msra.mxu0 0.0
    %84 = vmatprep.subr.mxu0 0.0
    %85 = vmatpush1.msra.mxu0 0.0
    %86 = vmatprep.subr.mxu0 0.0
    %87 = vmatpush1.msra.mxu0 0.0
    %88 = vmatprep.subr.mxu0 0.0
    %89 = vmatpush1.msra.mxu0 0.0
    %90 = vmatprep.subr.mxu0 0.0
    %91 = vmatpush1.msra.mxu0 0.0
    %92 = vmatprep.subr.mxu0 0.0
    %93 = vmatpush1.msra.mxu0 0.0
    %94 = vmatprep.subr.mxu0 0.0
    %95 = vmatpush1.msra.mxu0 0.0
    %96 = vmatprep.subr.mxu0 0.0
    %97 = vmatpush1.msra.mxu0 0.0
    %98 = vmatprep.subr.mxu0 0.0
    %99 = vmatpush1.msra.mxu0 0.0
    %100 = vmatprep.subr.mxu0 0.0
    %101 = vmatpush1.msra.mxu0 0.0
    %102 = vmatprep.subr.mxu0 0.0
    %103 = vmatpush1.msra.mxu0 0.0
    %104 = vmatprep.subr.mxu0 0.0
    %105 = vmatpush1.msra.mxu0 0.0
    %106 = vmatprep.subr.mxu0 0.0
    %107 = vmatpush1.msra.mxu0 0.0
    %108 = vmatprep.subr.mxu0 0.0
    %109 = vmatpush1.msra.mxu0 0.0
    %110 = vmatprep.subr.mxu0 0.0
    %111 = vmatpush1.msra.mxu0 0.0
    %112 = vmatprep.mubr.f32.mxu0 0.0
    %113 = vmatmul.mubr.f32.gmra.mrb[0].mxu0 %v46
    %v114 = vpop.f32.mrb[0].mxu0
    %v115 = vadd.f32 %v42, %v114
    %v116 = vpop.f32.mrb[0].mxu0
    %117 = vdwg.mxu0
    %v118 = vmax.f32 %v115, 0.0
    %v119 = vld [vmem:[#allocation2] sm:$0xff]
    %v120 = vld [vmem:[%s3] sm:$0xff]
    %v121 = vld [vmem:[%s3 + $0x8] sm:$0xff]
    %v122 = vld [vmem:[%s3 + $0x10] sm:$0xff]
    %v123 = vld [vmem:[%s3 + $0x18] sm:$0xff]
    %vm124 = vcmask 261120
    %v126 = vsel %vm124, %v118, 0
    %128 = vmatprep.subr.mxu0 0.0
    %129 = vmatpush1.msra.mxu0 %v120
    %130 = vmatprep.subr.mxu0 0.0
    %131 = vmatpush1.msra.mxu0 %v121
    %132 = vmatprep.subr.mxu0 0.0
    %133 = vmatpush1.msra.mxu0 %v122
    %134 = vmatprep.subr.mxu0 0.0
    %135 = vmatpush1.msra.mxu0 %v123
    %136 = vmatprep.subr.mxu0 0.0
    %137 = vmatpush1.msra.mxu0 0.0
    %138 = vmatprep.subr.mxu0 0.0
    %139 = vmatpush1.msra.mxu0 0.0
    %140 = vmatprep.subr.mxu0 0.0
    %141 = vmatpush1.msra.mxu0 0.0
    %142 = vmatprep.subr.mxu0 0.0
    %143 = vmatpush1.msra.mxu0 0.0
    %144 = vmatprep.subr.mxu0 0.0
    %145 = vmatpush1.msra.mxu0 0.0
    %146 = vmatprep.subr.mxu0 0.0
    %147 = vmatpush1.msra.mxu0 0.0
    %148 = vmatprep.subr.mxu0 0.0
    %149 = vmatpush1.msra.mxu0 0.0
    %150 = vmatprep.subr.mxu0 0.0
    %151 = vmatpush1.msra.mxu0 0.0
    %152 = vmatprep.subr.mxu0 0.0
    %153 = vmatpush1.msra.mxu0 0.0
    %154 = vmatprep.subr.mxu0 0.0
    %155 = vmatpush1.msra.mxu0 0.0
    %156 = vmatprep.subr.mxu0 0.0
    %157 = vmatpush1.msra.mxu0 0.0
    %158 = vmatprep.subr.mxu0 0.0
    %159 = vmatpush1.msra.mxu0 0.0
    %160 = vmatprep.subr.mxu0 0.0
    %161 = vmatpush1.msra.mxu0 0.0
    %162 = vmatprep.subr.mxu0 0.0
    %163 = vmatpush1.msra.mxu0 0.0
    %164 = vmatprep.subr.mxu0 0.0
    %165 = vmatpush1.msra.mxu0 0.0
    %166 = vmatprep.subr.mxu0 0.0
    %167 = vmatpush1.msra.mxu0 0.0
    %168 = vmatprep.subr.mxu0 0.0
    %169 = vmatpush1.msra.mxu0 0.0
    %170 = vmatprep.subr.mxu0 0.0
    %171 = vmatpush1.msra.mxu0 0.0
    %172 = vmatprep.subr.mxu0 0.0
    %173 = vmatpush1.msra.mxu0 0.0
    %174 = vmatprep.subr.mxu0 0.0
    %175 = vmatpush1.msra.mxu0 0.0
    %176 = vmatprep.subr.mxu0 0.0
    %177 = vmatpush1.msra.mxu0 0.0
    %178 = vmatprep.subr.mxu0 0.0
    %179 = vmatpush1.msra.mxu0 0.0
    %180 = vmatprep.subr.mxu0 0.0
    %181 = vmatpush1.msra.mxu0 0.0
    %182 = vmatprep.subr.mxu0 0.0
    %183 = vmatpush1.msra.mxu0 0.0
    %184 = vmatprep.subr.mxu0 0.0
    %185 = vmatpush1.msra.mxu0 0.0
    %186 = vmatprep.subr.mxu0 0.0
    %187 = vmatpush1.msra.mxu0 0.0
    %188 = vmatprep.subr.mxu0 0.0
    %189 = vmatpush1.msra.mxu0 0.0
    %190 = vmatprep.subr.mxu0 0.0
    %191 = vmatpush1.msra.mxu0 0.0
    %192 = vmatprep.mubr.f32.mxu0 0.0
    %193 = vmatmul.mubr.f32.gmra.mrb[0].mxu0 %v126
    %v194 = vpop.f32.mrb[0].mxu0
    %v195 = vadd.f32 0.0, %v194
    %v196 = vpop.f32.mrb[0].mxu0
    %197 = vdwg.mxu0
    %v198 = vadd.f32 %v119, %v195
    %199 = vst.msk [vmem:[#allocation2] sm:$0xff] %vm44, %v198
    // Predicated region
    $region26: #{tpu_custom_call.1} parent=1 // pred_check
      _
    $region27: #{tpu_custom_call.1} parent=1 // pred_check_branch
      %201 = sbr.rel (0) target = $region29
    $region28: #{tpu_custom_call.1} parent=1 // pred_region
      %s203 = ssub.s32 128, 128
      %204 = vsyncadd [#allocation3], %s203
      %s206 = sshll.u32 [#allocation2], 4
      %s207 = int_to_ptr.vmem [resolvable:$true] %s206
      %209 = dma.vmem_to_hbm [thread:$0]  %s207, 128, %s5, [#allocation3]
    $region29: #{tpu_custom_call.1} parent=1 // pred_fallthru
      _
    // Predicated region
    $region30: #{tpu_custom_call.1} parent=1 // pred_check
      _
    $region31: #{tpu_custom_call.1} parent=1 // pred_check_branch
      %211 = sbr.rel (0) target = $region33
    $region32: #{tpu_custom_call.1} parent=1 // pred_region
      %212 = dma.done [#allocation3], 128
    $region33: #{tpu_custom_call.1} parent=1 // pred_fallthru
      _
    %213 = vsyncpa [#allocation3], 1

</llo_original>
